<compile_context>
chip_gen: v7x
topology: tpu7x:2x2x1
jax: 0.10.0
libtpu: 0.0.40
codegen_flags: <defaults>
</compile_context>

<pallas_src>
import math

import jax
import jax.numpy as jnp
from jax import lax
from jax.experimental import pallas as pl
from jax.experimental.pallas import tpu as pltpu


def _round_up(x, m):
    return (x + m - 1) // m * m


def _patch_embed_kernel(p_ref, w_ref, b_ref, o_ref):
    # p_ref: (TM, K) bf16 patches; w_ref: (K, E_pad) bf16 VMEM-resident weights;
    # b_ref: (1, E_pad) f32 bias.  f32 MXU accumulation, cast at the final store.
    acc = jnp.dot(p_ref[...], w_ref[...], preferred_element_type=jnp.float32)
    o_ref[...] = (acc + b_ref[...]).astype(o_ref.dtype)


def patch_embed_overlap(x, weight, bias, patch_size, stride_size, *,
                        compute_dtype=jnp.bfloat16, out_dtype=jnp.float32):
    """x: (B, C, H, W); weight: (E, C, ph, pw); bias: (E,).

    Returns (B, num_patches, E), matching PatchEmbed_overlap.forward
    (conv2d -> flatten(2) -> transpose(1, 2)).
    """
    B, C, H, W = x.shape
    E = weight.shape[0]
    ph, pw = patch_size
    sh, sw = stride_size
    num_y = (H - ph) // sh + 1
    num_x = (W - pw) // sw + 1
    N = num_y * num_x
    K = C * ph * pw
    M = B * N

    # --- glue: native overlapping-patch extraction (single fused XLA op).
    # Feature order of extracted patches is (c, i, j), matching weight layout.
    x_c = x.astype(compute_dtype)
    patches = lax.conv_general_dilated_patches(
        x_c, filter_shape=(ph, pw), window_strides=(sh, sw), padding="VALID",
        dimension_numbers=("NCHW", "OIHW", "NHWC"),
    )  # (B, num_y, num_x, K); patch n = y*num_x + x
    patches = patches.reshape(M, K)

    w2d = weight.reshape(E, K).T.astype(compute_dtype)    # (K, E)
    b2d = bias.astype(jnp.float32).reshape(1, E)           # (1, E)

    # --- lane-dense, full-E output tiles; weights resident in VMEM ---
    E_pad = _round_up(E, 128)
    if E_pad != E:
        w2d = jnp.pad(w2d, ((0, 0), (0, E_pad - E)))
        b2d = jnp.pad(b2d, ((0, 0), (0, E_pad - E)))

    in_it = jnp.dtype(compute_dtype).itemsize
    out_it = jnp.dtype(out_dtype).itemsize

    # VMEM working-set budget (assume everything double-buffered, conservative):
    #   resident weights/bias + per-row-tile patches + output.
    weight_vmem = 2 * (K * E_pad * in_it + E_pad * 4)
    per_row_vmem = 2 * (K * in_it + E_pad * out_it)
    budget = (40 << 20) - weight_vmem
    tm_cap = max(16, (budget // per_row_vmem) // 16 * 16)

    # TM: multiple of 16 (bf16 sublane packing), capped by VMEM budget and by
    # "at least ~4 grid tiles" so v7x's two TensorCores both get work.
    TM = min(1024, tm_cap, max(16, _round_up(pl.cdiv(M, 4), 16)))
    M_pad = _round_up(M, TM)
    if M_pad != M:
        patches = jnp.pad(patches, ((0, M_pad - M), (0, 0)))

    grid = (M_pad // TM,)

    cost = pl.CostEstimate(
        flops=2 * M_pad * K * E_pad,
        transcendentals=0,
        bytes_accessed=(M_pad * K * in_it          # patches (read once)
                        + K * E_pad * in_it        # weights (read once, resident)
                        + E_pad * 4                # bias
                        + M_pad * E_pad * out_it), # output writeback
    )

    out = pl.pallas_call(
        _patch_embed_kernel,
        out_shape=jax.ShapeDtypeStruct((M_pad, E_pad), out_dtype),
        grid=grid,
        in_specs=[
            pl.BlockSpec((TM, K), lambda i: (i, 0)),        # streamed per tile
            pl.BlockSpec((K, E_pad), lambda i: (0, 0)),     # VMEM-resident weights
            pl.BlockSpec((1, E_pad), lambda i: (0, 0)),     # VMEM-resident bias
        ],
        out_specs=pl.BlockSpec((TM, E_pad), lambda i: (i, 0)),
        compiler_params=pltpu.CompilerParams(
            dimension_semantics=("parallel",),
            vmem_limit_bytes=48 << 20),
        cost_estimate=cost,
    )(patches, w2d, b2d)

    return out[:M, :E].reshape(B, N, E)


if __name__ == "__main__":
    # Small, consistent configuration (overlapping: stride < patch size).
    B, C = 2, 4
    img_size = (16, 16)
    patch_size = (8, 8)
    stride_size = (4, 4)
    embed_dim = 32

    num_y = (img_size[0] - patch_size[0]) // stride_size[0] + 1
    num_x = (img_size[1] - patch_size[1]) // stride_size[1] + 1

    key = jax.random.PRNGKey(0)
    kx, kw, kb = jax.random.split(key, 3)

    x = jax.random.normal(kx, (B, C, img_size[0], img_size[1]), dtype=jnp.float32)

    # Deterministic init matching the module's __init__:
    #   conv weight ~ N(0, sqrt(2 / (ph*pw*embed_dim)))
    n_fan = patch_size[0] * patch_size[1] * embed_dim
    weight = jax.random.normal(
        kw, (embed_dim, C, patch_size[0], patch_size[1]), dtype=jnp.float32
    ) * math.sqrt(2.0 / n_fan)
    # Conv2d default bias init: U(-1/sqrt(fan_in), 1/sqrt(fan_in))
    fan_in = C * patch_size[0] * patch_size[1]
    bound = 1.0 / math.sqrt(fan_in)
    bias = jax.random.uniform(
        kb, (embed_dim,), minval=-bound, maxval=bound, dtype=jnp.float32
    )

    out = patch_embed_overlap(x, weight, bias, patch_size, stride_size)
    out = jax.block_until_ready(out)

    # Sanity check against XLA's conv2d (NCHW, valid padding) + flatten/transpose.
    ref_conv = lax.conv_general_dilated(
        x, weight, window_strides=stride_size, padding="VALID",
        dimension_numbers=("NCHW", "OIHW", "NCHW"),
    ) + bias.reshape(1, embed_dim, 1, 1)
    ref = ref_conv.reshape(B, embed_dim, num_y * num_x).transpose(0, 2, 1)
    assert out.shape == (B, num_y * num_x, embed_dim)
    # bf16 MXU inputs with f32 accumulation -> loose-but-safe tolerance.
    assert jnp.allclose(out, ref, atol=2e-2, rtol=2e-2), (
        float(jnp.max(jnp.abs(out - ref))))

    print("KERNEL_OK")
</pallas_src>

<mosaic_0001>
module attributes {stable_mosaic.version = 11 : i64} {
  func.func @_patch_embed_kernel(%arg0: i32, %arg1: memref<16x256xbf16, #tpu.memory_space<vmem>>, %arg2: memref<256x128xbf16, #tpu.memory_space<vmem>>, %arg3: memref<1x128xf32, #tpu.memory_space<vmem>>, %arg4: memref<16x128xf32, #tpu.memory_space<vmem>>) attributes {dimension_semantics = [#tpu.dimension_semantics<parallel>], iteration_bounds = array<i64: 2>, scalar_prefetch = 0 : i64, scratch_operands = 0 : i64, tpu.core_type = #tpu.core_type<tc>, window_params = [{transform_indices = @transform_0, window_bounds = array<i64: 16, 256>}, {pipeline_mode = #tpu.pipeline_mode<synchronous>, transform_indices = @transform_1, window_bounds = array<i64: 256, 128>}, {pipeline_mode = #tpu.pipeline_mode<synchronous>, transform_indices = @transform_2, window_bounds = array<i64: 1, 128>}, {transform_indices = @transform_3, window_bounds = array<i64: 16, 128>}]} {
    %c0 = arith.constant 0 : index
    %c0_0 = arith.constant 0 : index
    %0 = vector.load %arg1[%c0, %c0_0] : memref<16x256xbf16, #tpu.memory_space<vmem>>, vector<16x256xbf16>
    %c0_1 = arith.constant 0 : index
    %c0_2 = arith.constant 0 : index
    %1 = vector.load %arg2[%c0_1, %c0_2] : memref<256x128xbf16, #tpu.memory_space<vmem>>, vector<256x128xbf16>
    %cst = arith.constant dense<0.000000e+00> : vector<16x128xf32>
    %2 = tpu.matmul %0, %1, %cst {dimension_numbers = #tpu.dot_dimension_numbers<[1], [0], [0], [1], [0, 0, 1, 1], [], []>} : vector<16x256xbf16>, vector<256x128xbf16>, vector<16x128xf32> -> vector<16x128xf32>
    %c0_3 = arith.constant 0 : index
    %c0_4 = arith.constant 0 : index
    %3 = vector.load %arg3[%c0_3, %c0_4] : memref<1x128xf32, #tpu.memory_space<vmem>>, vector<1x128xf32>
    %4 = vector.broadcast %3 : vector<1x128xf32> to vector<16x128xf32>
    %5 = arith.addf %2, %4 : vector<16x128xf32>
    %c0_5 = arith.constant 0 : index
    %c0_6 = arith.constant 0 : index
    %6 = vector.load %arg4[%c0_5, %c0_6] : memref<16x128xf32, #tpu.memory_space<vmem>>, vector<16x128xf32>
    tpu.vector_store %arg4[%c0_5, %c0_6], %5 {strides = array<i32>} : memref<16x128xf32, #tpu.memory_space<vmem>>, vector<16x128xf32>,
    return
  }
  func.func @transform_0(%arg0: i32) -> (i32, i32) {
    %c0_i32 = arith.constant 0 : i32
    %c0_i32_0 = arith.constant 0 : i32
    return %arg0, %c0_i32 : i32, i32
  }
  func.func @transform_1(%arg0: i32) -> (i32, i32) {
    %c0_i32 = arith.constant 0 : i32
    %c0_i32_0 = arith.constant 0 : i32
    %c0_i32_1 = arith.constant 0 : i32
    return %c0_i32, %c0_i32_0 : i32, i32
  }
  func.func @transform_2(%arg0: i32) -> (i32, i32) {
    %c0_i32 = arith.constant 0 : i32
    %c0_i32_0 = arith.constant 0 : i32
    %c0_i32_1 = arith.constant 0 : i32
    return %c0_i32, %c0_i32_0 : i32, i32
  }
  func.func @transform_3(%arg0: i32) -> (i32, i32) {
    %c0_i32 = arith.constant 0 : i32
    %c0_i32_0 = arith.constant 0 : i32
    return %arg0, %c0_i32 : i32, i32
  }
}

</mosaic_0001>

<llo_original>
// kernel: tpu_custom_call.1
$region0: #{tpu_custom_call.1}
  #allocation0 [shape = 'u32[]', space=smem, size = 0x4, offset = 0x4, fixed_abs, tag = 'smem constant byte address 0x4 - core index']
  #allocation1 [shape = 'u32[144,128]{1,0:T(1,128)}', space=vmem, size = 0x12000, scoped, tag = 'internal scratch']
  %s0 = inlined_call_operand.hbm [shape: bf16[32,256], index: 0, kind: input, shape index: {}]
  %s1 = inlined_call_operand.hbm [shape: bf16[256,128], index: 1, kind: input, shape index: {}]
  %s2 = inlined_call_operand.vmem [shape: f32[1,128], index: 2, kind: input, shape index: {}]
  %s3 = inlined_call_operand.hbm [shape: f32[32,128], index: 3, kind: output, shape index: {}]
  %s4 = sld [smem:[#allocation0]]
  $region53: #{tpu_custom_call.1} parent=0
    _
  %s6 = ssub.s32 1, %s4
  %s7 = scalar_select 0, %s6, %s4
  $region1: #{tpu_custom_call.1} parent=0
    #allocation2 [shape = 'u8[16384]{0}', space=vmem, size = 0x4000, scoped, tag = 'input window, operand 0']
    #allocation3 [shape = 's32[2]{0}', space=sflag, size = 0x8, scoped, tag = 'scoped memory for tpu_custom_call.1']
    #allocation4 [shape = 's32[2]{0}', space=sflag, size = 0x8, scoped, tag = 'scoped memory for tpu_custom_call.1']
    #allocation5 [shape = 'u8[65536]{0}', space=vmem, size = 0x10000, scoped, tag = 'input window, operand 1, single buffered']
    #allocation6 [shape = 's32[1]{0}', space=sflag, size = 0x4, scoped, tag = 'scoped memory for tpu_custom_call.1']
    #allocation7 [shape = 'u8[16384]{0}', space=vmem, size = 0x4000, scoped, tag = 'output window, operand 0']
    %8 = vsyncpa [#allocation3], 0
    %s9 = scalar_lea.sflag [#allocation3], 1
    %10 = vsyncpa %s9, 0
    %11 = vsyncpa [#allocation6], 0
    %12 = vsyncpa [#allocation4], 0
    %s13 = scalar_lea.sflag [#allocation4], 1
    %14 = vsyncpa %s13, 0
    loop: start=0, step=1, limit=4
    $region2: #{tpu_custom_call.1} parent=1 // loop_pre_header
      _
    $region3: #{tpu_custom_call.1} parent=1 // loop_header
      %s16 = sphi 0, %s20
      %p17 = scmp.ge.s32.totalorder %s16, 4
      %s26 = sphi 0, %s28
      %s29 = sphi 0, %s26
      %s30 = sphi 0, %s29
      %s46 = sphi 0, %s30
      %s50 = sphi 0, %s50
      %s52 = sphi 0, %s50
      %s53 = sphi 0, %s52
      %s67 = sphi 0, %s53
      %s71 = sphi 0, %s71
      %s73 = sphi 0, %s71
      %s74 = sphi 0, %s73
      %s88 = sphi 0, %s74
      %s94 = sphi 0, %s96
      %s97 = sphi 0, %s94
      %s98 = sphi 0, %s97
      %s114 = sphi 0, %s98
    $region4: #{tpu_custom_call.1} parent=1 // loop_header_branch
      %19 = sbr.rel (%p17) target = $region8
    $region5: #{tpu_custom_call.1} parent=1 // loop_body
      %s21 = ssub.s32 %s16, 1
      %s22 = ssub.s32 %s16, 2
      %s23 = sadd.s32 %s16, 1
      %s24 = ssub.s32 %s16, %s23
      %p25 = scmp.eq.s32.totalorder %s24, 0
      %s27 = sadd.s32 %s26, 1
      %s28 = scalar_select %p25, %s26, %s27
      %p31 = pneg %p25
      %p32 = scmp.eq.s32.totalorder %s16, 1
      %p33 = por %p31, %p32
      %p34 = scmp.ne.s32.totalorder %s26, %s29
      %p35 = scmp.eq.s32.totalorder %s16, 0
      %p36 = por %p34, %p35
      %p37 = scmp.ne.s32.totalorder %s26, %s29
      %p38 = scmp.eq.s32.totalorder %s21, 1
      %p39 = por %p37, %p38
      %p40 = scmp.ne.s32.totalorder %s29, %s30
      %p41 = scmp.eq.s32.totalorder %s21, 0
      %p42 = por %p40, %p41
      %p43 = scmp.ne.s32.totalorder %s29, %s30
      %p44 = scmp.eq.s32.totalorder %s22, 1
      %p45 = por %p43, %p44
      %p47 = scmp.ne.s32.totalorder %s30, %s46
      %p48 = scmp.eq.s32.totalorder %s22, 0
      %p49 = por %p47, %p48
      %s51 = sadd.s32 %s50, 1
      %p54 = scmp.eq.s32.totalorder %s16, 1
      %p55 = scmp.ne.s32.totalorder %s50, %s52
      %p56 = scmp.eq.s32.totalorder %s16, 0
      %p57 = por %p55, %p56
      %p58 = scmp.ne.s32.totalorder %s50, %s52
      %p59 = scmp.eq.s32.totalorder %s21, 1
      %p60 = por %p58, %p59
      %p61 = scmp.ne.s32.totalorder %s52, %s53
      %p62 = scmp.eq.s32.totalorder %s21, 0
      %p63 = por %p61, %p62
      %p64 = scmp.ne.s32.totalorder %s52, %s53
      %p65 = scmp.eq.s32.totalorder %s22, 1
      %p66 = por %p64, %p65
      %p68 = scmp.ne.s32.totalorder %s53, %s67
      %p69 = scmp.eq.s32.totalorder %s22, 0
      %p70 = por %p68, %p69
      %s72 = sadd.s32 %s71, 1
      %p75 = scmp.eq.s32.totalorder %s16, 1
      %p76 = scmp.ne.s32.totalorder %s71, %s73
      %p77 = scmp.eq.s32.totalorder %s16, 0
      %p78 = por %p76, %p77
      %p79 = scmp.ne.s32.totalorder %s71, %s73
      %p80 = scmp.eq.s32.totalorder %s21, 1
      %p81 = por %p79, %p80
      %p82 = scmp.ne.s32.totalorder %s73, %s74
      %p83 = scmp.eq.s32.totalorder %s21, 0
      %p84 = por %p82, %p83
      %p85 = scmp.ne.s32.totalorder %s73, %s74
      %p86 = scmp.eq.s32.totalorder %s22, 1
      %p87 = por %p85, %p86
      %p89 = scmp.ne.s32.totalorder %s74, %s88
      %p90 = scmp.eq.s32.totalorder %s22, 0
      %p91 = por %p89, %p90
      %s92 = ssub.s32 %s16, %s23
      %p93 = scmp.eq.s32.totalorder %s92, 0
      %s95 = sadd.s32 %s94, 1
      %s96 = scalar_select %p93, %s94, %s95
      %p99 = pneg %p93
      %p100 = scmp.eq.s32.totalorder %s16, 1
      %p101 = por %p99, %p100
      %p102 = scmp.ne.s32.totalorder %s94, %s97
      %p103 = scmp.eq.s32.totalorder %s16, 0
      %p104 = por %p102, %p103
      %p105 = scmp.ne.s32.totalorder %s94, %s97
      %p106 = scmp.eq.s32.totalorder %s21, 1
      %p107 = por %p105, %p106
      %p108 = scmp.ne.s32.totalorder %s97, %s98
      %p109 = scmp.eq.s32.totalorder %s21, 0
      %p110 = por %p108, %p109
      %p111 = scmp.ne.s32.totalorder %s97, %s98
      %p112 = scmp.eq.s32.totalorder %s22, 1
      %p113 = por %p111, %p112
      %p115 = scmp.ne.s32.totalorder %s98, %s114
      %p116 = scmp.eq.s32.totalorder %s22, 0
      %p117 = por %p115, %p116
      %p118 = scmp.le.s32.totalorder 1, %s16
      %p119 = scmp.lt.s32.totalorder %s16, 3
      %p120 = pnand %p118, %p119
      %p121 = pneg %p120
      // Predicated region
      $region9: #{tpu_custom_call.1} parent=5 // pred_check
        _
      $region10: #{tpu_custom_call.1} parent=5 // pred_check_branch
        %123 = sbr.rel (%p120) target = $region12
      $region11: #{tpu_custom_call.1} parent=5 // pred_region
        %s124 = ssub.s32 %s16, 1
        // Predicated region
        $region13: #{tpu_custom_call.1} parent=11 // pred_check
          %p125 = pneg %p63
        $region14: #{tpu_custom_call.1} parent=11 // pred_check_branch
          %127 = sbr.rel (%p125) target = $region16
        $region15: #{tpu_custom_call.1} parent=11 // pred_region
          %s129 = ssub.s32 2048, 2048
          %130 = vsyncadd [#allocation6], %s129
          %s131 = sshll.u32 [#allocation5], 4
          %s132 = int_to_ptr.vmem [resolvable:$true] %s131
          %137 = dma.hbm_to_vmem [thread:$0]  %s1, 2048, %s132, [#allocation6], 64, 64, 4
        $region16: #{tpu_custom_call.1} parent=11 // pred_fallthru
          _
        // Predicated region
        $region17: #{tpu_custom_call.1} parent=11 // pred_check
          %p138 = pneg %p84
        $region18: #{tpu_custom_call.1} parent=11 // pred_check_branch
          %140 = sbr.rel (%p138) target = $region20
        $region19: #{tpu_custom_call.1} parent=11 // pred_region
          _
        $region20: #{tpu_custom_call.1} parent=11 // pred_fallthru
          _
      $region12: #{tpu_custom_call.1} parent=5 // pred_fallthru
        _
      %p141 = scmp.lt.s32.totalorder %s16, 2
      // Predicated region
      $region21: #{tpu_custom_call.1} parent=5 // pred_check
        %p142 = pneg %p141
      $region22: #{tpu_custom_call.1} parent=5 // pred_check_branch
        %144 = sbr.rel (%p142) target = $region24
      $region23: #{tpu_custom_call.1} parent=5 // pred_region
        // Predicated region
        $region25: #{tpu_custom_call.1} parent=23 // pred_check
          %p145 = pneg %p36
        $region26: #{tpu_custom_call.1} parent=23 // pred_check_branch
          %147 = sbr.rel (%p145) target = $region28
        $region27: #{tpu_custom_call.1} parent=23 // pred_region
          %s148 = sand.u32 %s26, 1
          %s149 = scalar_lea.sflag [#allocation3], %s148
          %s150 = sand.u32 %s26, 1
          %s151 = smul.addr %s150, 16
          %s152 = scalar_lea.vmem [#allocation2], %s151
          %s153 = smul.u32 2, %s16
          %s155 = ssub.s32 256, 256
          %156 = vsyncadd %s149, %s155
          %s157 = smul.addr %s153, 2
          %s158 = smul.addr %s157, 64
          %s159 = scalar_lea.hbm %s0, %s158
          %s160 = sshll.u32 %s152, 4
          %s161 = int_to_ptr.vmem [resolvable:$true] %s160
          %166 = dma.hbm_to_vmem [thread:$0]  %s159, 256, %s161, %s149, 128, 128, 8
        $region28: #{tpu_custom_call.1} parent=23 // pred_fallthru
          _
      $region24: #{tpu_custom_call.1} parent=5 // pred_fallthru
        _
      %p167 = scmp.le.s32.totalorder 1, %s16
      %p168 = scmp.lt.s32.totalorder %s16, 3
      %p169 = pnand %p167, %p168
      %p170 = pneg %p169
      // Predicated region
      $region29: #{tpu_custom_call.1} parent=5 // pred_check
        _
      $region30: #{tpu_custom_call.1} parent=5 // pred_check_branch
        %172 = sbr.rel (%p169) target = $region32
      $region31: #{tpu_custom_call.1} parent=5 // pred_region
        %s173 = ssub.s32 %s16, 1
        %s174 = sand.u32 %s29, 1
        %s175 = scalar_lea.sflag [#allocation3], %s174
        %s176 = sand.u32 %s29, 1
        %s177 = smul.addr %s176, 16
        %s178 = scalar_lea.vmem [#allocation2], %s177
        // Predicated region
        $region33: #{tpu_custom_call.1} parent=31 // pred_check
          %p179 = pneg %p42
        $region34: #{tpu_custom_call.1} parent=31 // pred_check_branch
          %181 = sbr.rel (%p179) target = $region36
        $region35: #{tpu_custom_call.1} parent=31 // pred_region
          %182 = dma.done %s175, 256
        $region36: #{tpu_custom_call.1} parent=31 // pred_fallthru
          _
        // Predicated region
        $region37: #{tpu_custom_call.1} parent=31 // pred_check
          %p183 = pneg %p63
        $region38: #{tpu_custom_call.1} parent=31 // pred_check_branch
          %185 = sbr.rel (%p183) target = $region40
        $region39: #{tpu_custom_call.1} parent=31 // pred_region
          %186 = dma.done [#allocation6], 2048
        $region40: #{tpu_custom_call.1} parent=31 // pred_fallthru
          _
        %s187 = sand.u32 %s29, 1
        %s188 = scalar_lea.sflag [#allocation3], %s187
        %s189 = sand.u32 %s29, 1
        %s190 = smul.addr %s189, 16
        %s191 = scalar_lea.vmem [#allocation2], %s190
        %p192 = pneg %p42
        %p193 = pneg %p39
        %p194 = pneg %p63
        %p195 = pneg %p60
        %p196 = pneg %p84
        %p197 = pneg %p81
        %p198 = pneg %p110
        %p199 = pneg %p107
        %s200 = sand.u32 %s97, 1
        %s201 = scalar_lea.sflag [#allocation4], %s200
        %s202 = sand.u32 %s97, 1
        %s203 = smul.addr %s202, 16
        %s204 = scalar_lea.vmem [#allocation7], %s203
        %s205 = smul.u32 2, %s21
        %s206 = smul.u32 2, %s21
        %v208 = vld [vmem:[%s178] sm:$0xff]
        %v209 = vld [vmem:[%s178 + $0x8] sm:$0xff]
        %v210 = vld [vmem:[#allocation5] sm:$0xf]
        %v211 = vld [vmem:[#allocation5 + $0x4] sm:$0xf]
        %v212 = vld [vmem:[#allocation5 + $0x8] sm:$0xf]
        %v213 = vld [vmem:[#allocation5 + $0xc] sm:$0xf]
        %v214 = vld [vmem:[#allocation5 + $0x10] sm:$0xf]
        %v215 = vld [vmem:[#allocation5 + $0x14] sm:$0xf]
        %v216 = vld [vmem:[#allocation5 + $0x18] sm:$0xf]
        %v217 = vld [vmem:[#allocation5 + $0x1c] sm:$0xf]
        %v218 = vld [vmem:[#allocation5 + $0x20] sm:$0xf]
        %v219 = vld [vmem:[#allocation5 + $0x24] sm:$0xf]
        %v220 = vld [vmem:[#allocation5 + $0x28] sm:$0xf]
        %v221 = vld [vmem:[#allocation5 + $0x2c] sm:$0xf]
        %v222 = vld [vmem:[#allocation5 + $0x30] sm:$0xf]
        %v223 = vld [vmem:[#allocation5 + $0x34] sm:$0xf]
        %v224 = vld [vmem:[#allocation5 + $0x38] sm:$0xf]
        %v225 = vld [vmem:[#allocation5 + $0x3c] sm:$0xf]
        %v226 = vld [vmem:[#allocation5 + $0x40] sm:$0xf]
        %v227 = vld [vmem:[#allocation5 + $0x44] sm:$0xf]
        %v228 = vld [vmem:[#allocation5 + $0x48] sm:$0xf]
        %v229 = vld [vmem:[#allocation5 + $0x4c] sm:$0xf]
        %v230 = vld [vmem:[#allocation5 + $0x50] sm:$0xf]
        %v231 = vld [vmem:[#allocation5 + $0x54] sm:$0xf]
        %v232 = vld [vmem:[#allocation5 + $0x58] sm:$0xf]
        %v233 = vld [vmem:[#allocation5 + $0x5c] sm:$0xf]
        %v234 = vld [vmem:[#allocation5 + $0x60] sm:$0xf]
        %v235 = vld [vmem:[#allocation5 + $0x64] sm:$0xf]
        %v236 = vld [vmem:[#allocation5 + $0x68] sm:$0xf]
        %v237 = vld [vmem:[#allocation5 + $0x6c] sm:$0xf]
        %v238 = vld [vmem:[#allocation5 + $0x70] sm:$0xf]
        %v239 = vld [vmem:[#allocation5 + $0x74] sm:$0xf]
        %v240 = vld [vmem:[#allocation5 + $0x78] sm:$0xf]
        %v241 = vld [vmem:[#allocation5 + $0x7c] sm:$0xf]
        %v242 = vld [vmem:[%s2] sm:$0x1]
        %v244 = vlaneseq
        %v245 = vshrl.u32 %v244, 7
        %v246 = vsub.s32 0, %v245
        %v247 = vrot.slane %v242, %v246
        %v251 = vunpack.c.l.b16 %v208
        %v252 = vunpack.c.h.b16 %v208
        %v253 = vunpack.c.l.b16 %v209
        %v254 = vunpack.c.h.b16 %v209
        %v255 = vpack.c.b16 %v253, %v251
        %v256 = vpack.c.b16 %v254, %v252
        %v291 = vunpack.c.l.b16 %v210
        %v292 = vunpack.c.l.b16 %v211
        %v293 = vunpack.c.l.b16 %v212
        %v294 = vunpack.c.l.b16 %v213
        %v295 = vunpack.c.l.b16 %v214
        %v296 = vunpack.c.l.b16 %v215
        %v297 = vunpack.c.l.b16 %v216
        %v298 = vunpack.c.l.b16 %v217
        %v299 = vunpack.c.l.b16 %v218
        %v300 = vunpack.c.l.b16 %v219
        %v301 = vunpack.c.l.b16 %v220
        %v302 = vunpack.c.l.b16 %v221
        %v303 = vunpack.c.l.b16 %v222
        %v304 = vunpack.c.l.b16 %v223
        %v305 = vunpack.c.l.b16 %v224
        %v306 = vunpack.c.l.b16 %v225
        %v307 = vunpack.c.l.b16 %v226
        %v308 = vunpack.c.l.b16 %v227
        %v309 = vunpack.c.l.b16 %v228
        %v310 = vunpack.c.l.b16 %v229
        %v311 = vunpack.c.l.b16 %v230
        %v312 = vunpack.c.l.b16 %v231
        %v313 = vunpack.c.l.b16 %v232
        %v314 = vunpack.c.l.b16 %v233
        %v315 = vunpack.c.l.b16 %v234
        %v316 = vunpack.c.l.b16 %v235
        %v317 = vunpack.c.l.b16 %v236
        %v318 = vunpack.c.l.b16 %v237
        %v319 = vunpack.c.l.b16 %v238
        %v320 = vunpack.c.l.b16 %v239
        %v321 = vunpack.c.l.b16 %v240
        %v322 = vunpack.c.l.b16 %v241
        %v323 = vpack.c.b16 %v292, %v291
        %v324 = vpack.c.b16 %v294, %v293
        %v325 = vpack.c.b16 %v296, %v295
        %v326 = vpack.c.b16 %v298, %v297
        %v327 = vpack.c.b16 %v300, %v299
        %v328 = vpack.c.b16 %v302, %v301
        %v329 = vpack.c.b16 %v304, %v303
        %v330 = vpack.c.b16 %v306, %v305
        %v331 = vpack.c.b16 %v308, %v307
        %v332 = vpack.c.b16 %v310, %v309
        %v333 = vpack.c.b16 %v312, %v311
        %v334 = vpack.c.b16 %v314, %v313
        %v335 = vpack.c.b16 %v316, %v315
        %v336 = vpack.c.b16 %v318, %v317
        %v337 = vpack.c.b16 %v320, %v319
        %v338 = vpack.c.b16 %v322, %v321
        %355 = vmatprep.subr.bf16.mxu0 0
        %356 = vmatpush1.bf16.msra.mxu0 %v323
        %357 = vmatprep.subr.bf16.mxu0 0
        %358 = vmatpush1.bf16.msra.mxu0 %v324
        %359 = vmatprep.subr.bf16.mxu0 0
        %360 = vmatpush1.bf16.msra.mxu0 %v325
        %361 = vmatprep.subr.bf16.mxu0 0
        %362 = vmatpush1.bf16.msra.mxu0 %v326
        %363 = vmatprep.subr.bf16.mxu0 0
        %364 = vmatpush1.bf16.msra.mxu0 %v327
        %365 = vmatprep.subr.bf16.mxu0 0
        %366 = vmatpush1.bf16.msra.mxu0 %v328
        %367 = vmatprep.subr.bf16.mxu0 0
        %368 = vmatpush1.bf16.msra.mxu0 %v329
        %369 = vmatprep.subr.bf16.mxu0 0
        %370 = vmatpush1.bf16.msra.mxu0 %v330
        %371 = vmatprep.subr.bf16.mxu0 0
        %372 = vmatpush1.bf16.msra.mxu0 %v331
        %373 = vmatprep.subr.bf16.mxu0 0
        %374 = vmatpush1.bf16.msra.mxu0 %v332
        %375 = vmatprep.subr.bf16.mxu0 0
        %376 = vmatpush1.bf16.msra.mxu0 %v333
        %377 = vmatprep.subr.bf16.mxu0 0
        %378 = vmatpush1.bf16.msra.mxu0 %v334
        %379 = vmatprep.subr.bf16.mxu0 0
        %380 = vmatpush1.bf16.msra.mxu0 %v335
        %381 = vmatprep.subr.bf16.mxu0 0
        %382 = vmatpush1.bf16.msra.mxu0 %v336
        %383 = vmatprep.subr.bf16.mxu0 0
        %384 = vmatpush1.bf16.msra.mxu0 %v337
        %385 = vmatprep.subr.bf16.mxu0 0
        %386 = vmatpush1.bf16.msra.mxu0 %v338
        %387 = vmatprep.mubr.bf16.mxu0 %v256
        %388 = vmatmul.mubr.bf16.gmra.mrb[0].mxu0 %v255
        %v389 = vpop.f32.mrb[0].mxu0
        %v390 = vadd.f32 %v247, %v389
        %v391 = vpop.f32.mrb[0].mxu0
        %v392 = vpop.f32.mrb[0].mxu0
        %v393 = vadd.f32 %v247, %v392
        %v394 = vpop.f32.mrb[0].mxu0
        %395 = vdwg.mxu0
        %396 = vst [vmem:[%s204] sm:$0xff] %v390
        %397 = vst [vmem:[%s204 + $0x8] sm:$0xff] %v393
        %s398 = sand.u32 %s97, 1
        %s399 = scalar_lea.sflag [#allocation4], %s398
        %s400 = sand.u32 %s97, 1
        %s401 = smul.addr %s400, 16
        %s402 = scalar_lea.vmem [#allocation7], %s401
        // Predicated region
        $region41: #{tpu_custom_call.1} parent=31 // pred_check
          %p403 = pneg %p107
        $region42: #{tpu_custom_call.1} parent=31 // pred_check_branch
          %405 = sbr.rel (%p403) target = $region44
        $region43: #{tpu_custom_call.1} parent=31 // pred_region
          %s406 = smul.u32 2, %s21
          %s408 = ssub.s32 256, 256
          %409 = vsyncadd %s399, %s408
          %s410 = smul.addr %s406, 128
          %s411 = scalar_lea.hbm %s3, %s410
          %s412 = sshll.u32 %s402, 4
          %s413 = int_to_ptr.vmem [resolvable:$true] %s412
          %418 = dma.vmem_to_hbm [thread:$0]  %s413, 256, %s411, %s399, 128, 128, 8
        $region44: #{tpu_custom_call.1} parent=31 // pred_fallthru
          _
      $region32: #{tpu_custom_call.1} parent=5 // pred_fallthru
        _
      %p419 = scmp.le.s32.totalorder 2, %s16
      // Predicated region
      $region45: #{tpu_custom_call.1} parent=5 // pred_check
        %p420 = pneg %p419
      $region46: #{tpu_custom_call.1} parent=5 // pred_check_branch
        %422 = sbr.rel (%p420) target = $region48
      $region47: #{tpu_custom_call.1} parent=5 // pred_region
        %s423 = ssub.s32 %s16, 2
        // Predicated region
        $region49: #{tpu_custom_call.1} parent=47 // pred_check
          %p424 = pneg %p113
        $region50: #{tpu_custom_call.1} parent=47 // pred_check_branch
          %426 = sbr.rel (%p424) target = $region52
        $region51: #{tpu_custom_call.1} parent=47 // pred_region
          %s427 = sand.u32 %s98, 1
          %s428 = scalar_lea.sflag [#allocation4], %s427
          %s429 = sand.u32 %s98, 1
          %s430 = smul.addr %s429, 16
          %s431 = scalar_lea.vmem [#allocation7], %s430
          %432 = dma.done %s428, 256
        $region52: #{tpu_custom_call.1} parent=47 // pred_fallthru
          _
      $region48: #{tpu_custom_call.1} parent=5 // pred_fallthru
        _
    $region6: #{tpu_custom_call.1} parent=1 // loop_footer
      %s20 = sadd.s32 1, %s16
    $region7: #{tpu_custom_call.1} parent=1 // loop_footer_branch
      %15 = sbr.rel target = $region3
    $region8: #{tpu_custom_call.1} parent=1 // loop_exit
      _
    %433 = vsyncpa [#allocation3], 1
    %s434 = scalar_lea.sflag [#allocation3], 1
    %435 = vsyncpa %s434, 1
    %436 = vsyncpa [#allocation6], 1
    %437 = vsyncpa [#allocation4], 1
    %s438 = scalar_lea.sflag [#allocation4], 1
    %439 = vsyncpa %s438, 1

</llo_original>
